<compile_context>
chip_gen: v7x
topology: tpu7x:2x2x1
jax: 0.10.0
libtpu: 0.0.40
codegen_flags: <defaults>
</compile_context>

<pallas_src>
import functools

import jax
import jax.numpy as jnp
from jax.experimental import pallas as pl
from jax.experimental.pallas import tpu as pltpu


# -----------------------------------------------------------------------------
# Pallas kernel: one big MXU matmul + fused per-frame (bias + time-embed) add
# -----------------------------------------------------------------------------
def video_embed_kernel(patch_ref, w_ref, te_ref, o_ref):
    # patch_ref: (TM, K)   bf16   TM = F * N patch rows (F whole frames)
    # w_ref:     (K, D)    bf16   conv weight reshaped (C*P*P, D), grid-invariant
    # te_ref:    (F, 1, D) f32    per-frame additive table (time embed + conv bias)
    # o_ref:     (TM, D)   f32 (or bf16)
    y = jnp.dot(patch_ref[...], w_ref[...],
                preferred_element_type=jnp.float32)          # (TM, D) on the MXU
    frames = te_ref.shape[0]
    n = patch_ref.shape[0] // frames                         # patches per frame
    # Static unrolled per-frame broadcast-add + store (frame count is known at
    # trace time).  Keeps the f32 add exact and avoids any (F, N, D) reshape
    # of the big operand; the only non-full stores are sublane-masked, lane
    # width stays >= 128.
    for f in range(frames):
        chunk = y[f * n:(f + 1) * n, :] + te_ref[f]          # (N, D) + (1, D)
        o_ref[f * n:(f + 1) * n, :] = chunk.astype(o_ref.dtype)


# -----------------------------------------------------------------------------
# Plain-JAX glue
# -----------------------------------------------------------------------------
def _extract_patch_rows(x, patch_size):
    """(B, C, T, H, W) -> (B, T*N, C*P*P); K ordered (C, P, P) like conv weight."""
    B, C, T, H, W = x.shape
    P = patch_size
    Hp, Wp = H // P, W // P
    x = x.reshape(B, C, T, Hp, P, Wp, P)
    x = jnp.transpose(x, (0, 2, 3, 5, 1, 4, 6))              # (B, T, Hp, Wp, C, P, P)
    return x.reshape(B, T * Hp * Wp, C * P * P)


def _interp_time_embed(time_embed, new_T):
    """F.interpolate(mode='linear', align_corners=False) along the time axis.

    time_embed: (1, T_old, D) -> (1, new_T, D)
    """
    T_old = time_embed.shape[1]
    if T_old == new_T:
        return time_embed
    scale = T_old / new_T
    pos = (jnp.arange(new_T, dtype=jnp.float32) + 0.5) * scale - 0.5
    pos = jnp.clip(pos, 0.0, T_old - 1.0)
    lo = jnp.floor(pos).astype(jnp.int32)
    hi = jnp.minimum(lo + 1, T_old - 1)
    frac = (pos - lo.astype(jnp.float32))[None, :, None]
    te = time_embed
    return te[:, lo, :] * (1.0 - frac) + te[:, hi, :] * frac


def _vmem_capacity_bytes():
    """Chip VMEM capacity; conservative (v7x per-TC) fallback if unavailable."""
    try:
        return int(pltpu.get_tpu_info().vmem_capacity_bytes)
    except Exception:
        return 64 * 1024 * 1024


def _pick_frames_per_block(T, N, K, D, out_itemsize, budget_bytes, prefer_split):
    """Largest frame count F per grid step (row tile TM = F*N) that is legal
    for the BlockSpecs and fits the VMEM budget.

    Footprint counts: double-buffered patch/out/te blocks, the single-buffered
    (pl.Buffered(1)) weight, and the in-kernel f32 matmul result.
    """
    def footprint(f):
        tm = f * N
        return (2 * tm * K * 2                   # patch block (bf16), x2 buffers
                + 2 * tm * D * out_itemsize      # output block, x2 buffers
                + 2 * f * D * 4                  # te block (f32), x2 buffers
                + K * D * 2                      # weight (bf16), single-buffered
                + tm * D * 4)                    # in-kernel f32 matmul result

    def legal(f):
        # Grid needs T % f == 0; the (TM, K)/(TM, D) blocks need TM % 8 == 0
        # unless TM equals the full per-batch row dim (f == T).
        return T % f == 0 and ((f * N) % 8 == 0 or f == T)

    if prefer_split and T > 1:
        # B == 1: keep >= 2 grid steps on the frame axis so both v7x
        # TensorCores get work; harmless (one extra ~0.35us step) on 1-TC chips.
        candidates = list(range(T // 2, 0, -1)) + list(range(T, T // 2, -1))
    else:
        candidates = list(range(T, 0, -1))

    for f in candidates:
        if legal(f) and footprint(f) <= budget_bytes:
            return f, footprint(f)

    # Nothing fits the budget: take the smallest legal tile and let
    # vmem_limit_bytes grow to cover it.
    # TODO(synk): sub-frame row tiling if even a single frame overflows VMEM.
    for f in range(1, T + 1):
        if legal(f):
            return f, footprint(f)
    return T, footprint(T)                       # unreachable: f == T is always legal


def video_embed(x, conv_w, conv_b, time_embed, *, patch_size,
                out_dtype=jnp.float32):
    """Forward of VideoEmbed.

    x:          (B, C, T, H, W) float32
    conv_w:     (D, C, P, P)    patch-embed Conv2d weight (PyTorch layout)
    conv_b:     (D,)            patch-embed Conv2d bias
    time_embed: (1, num_frames, D)
    returns:    (B, T*N, D) out_dtype (default float32, matching the module)
    """
    B, C, T, H, W = x.shape
    P = patch_size
    D = conv_w.shape[0]
    assert H % P == 0 and W % P == 0, "H, W must be divisible by patch_size"
    Hp, Wp = H // P, W // P
    N = Hp * Wp
    K = C * P * P
    M = T * N                                    # patch rows per batch element

    # TODO(synk): fuse the patch gather into the kernel (memory_space=pl.ANY +
    # strided pltpu.make_async_copy) to remove this materialized im2col copy.
    # Cast to bf16 BEFORE the transpose so the copy is written/read at 2 B/elt.
    patches = _extract_patch_rows(x.astype(jnp.bfloat16), P)            # (B, M, K) bf16
    w2 = jnp.transpose(conv_w.reshape(D, K), (1, 0)).astype(jnp.bfloat16)  # (K, D) bf16

    # Compact per-frame additive table: interpolated time embedding + conv bias.
    te = _interp_time_embed(time_embed, T)[0] + conv_b[None, :]          # (T, D) f32
    te = te.astype(jnp.float32).reshape(T, 1, D)                         # (T, 1, D)

    cap = _vmem_capacity_bytes()
    budget = cap // 2                             # conservative: leave pipeline headroom
    F, fp = _pick_frames_per_block(T, N, K, D, jnp.dtype(out_dtype).itemsize,
                                   budget, prefer_split=(B == 1))
    TM = F * N
    vmem_limit = int(min(cap, max(fp + (4 << 20), 32 << 20)))

    grid = (B, T // F)

    out = pl.pallas_call(
        video_embed_kernel,
        out_shape=jax.ShapeDtypeStruct((B, M, D), out_dtype),
        grid_spec=pltpu.PrefetchScalarGridSpec(
            num_scalar_prefetch=0,
            grid=grid,
            in_specs=[
                # Patch rows: (TM, K) per step, leading batch dim squeezed.
                pl.BlockSpec((pl.Squeezed(), TM, K), lambda b, m: (b, m, 0)),
                # Grid-invariant weight: fetched once, single-buffered.
                pl.BlockSpec((K, D), lambda b, m: (0, 0),
                             pipeline_mode=pl.Buffered(1)),
                # Compact per-frame (time-embed + bias) table for this block.
                pl.BlockSpec((F, 1, D), lambda b, m: (m, 0, 0)),
            ],
            out_specs=pl.BlockSpec((pl.Squeezed(), TM, D), lambda b, m: (b, m, 0)),
        ),
        compiler_params=pltpu.CompilerParams(
            dimension_semantics=("parallel", "parallel"),
            vmem_limit_bytes=vmem_limit),
    )(patches, w2, te)

    # nn.Dropout(0.1) is identity at inference (eval mode), so no-op here.
    # TODO(synk): training-mode dropout (pltpu.prng_* mask) not implemented.
    return out                                    # (B, T*N, D)


# -----------------------------------------------------------------------------
# References (plain JAX) for sanity checks
# -----------------------------------------------------------------------------
def video_embed_ref(x, conv_w, conv_b, time_embed, *, patch_size,
                    matmul_dtype=jnp.float32):
    B, C, T, H, W = x.shape
    P = patch_size
    D = conv_w.shape[0]
    K = C * P * P
    N = (H // P) * (W // P)
    patches = _extract_patch_rows(x, P).astype(matmul_dtype)             # (B, M, K)
    w2 = conv_w.reshape(D, K).T.astype(matmul_dtype)                     # (K, D)
    y = jnp.einsum("bmk,kd->bmd", patches, w2,
                   preferred_element_type=jnp.float32)
    te = _interp_time_embed(time_embed, T)[0] + conv_b[None, :]          # (T, D)
    return y + jnp.repeat(te, N, axis=0)[None]                           # (B, M, D)


if __name__ == "__main__":
    # Small, deterministic shapes consistent with the module's forward.
    B, C, T, H, W = 2, 4, 8, 16, 16
    PATCH = 8
    EMBED_DIM = 128
    NUM_FRAMES = 6          # != T -> exercises the linear time-interp branch

    key = jax.random.PRNGKey(0)
    kx, kw, kb, kt = jax.random.split(key, 4)

    x = jax.random.normal(kx, (B, C, T, H, W), dtype=jnp.float32)
    conv_w = jax.random.normal(kw, (EMBED_DIM, C, PATCH, PATCH),
                               dtype=jnp.float32) * 0.02
    conv_b = jax.random.normal(kb, (EMBED_DIM,), dtype=jnp.float32) * 0.02
    # trunc_normal_(std=0.02) equivalent, deterministic
    time_embed = 0.02 * jax.random.truncated_normal(
        kt, -2.0, 2.0, (1, NUM_FRAMES, EMBED_DIM), dtype=jnp.float32)

    fn = jax.jit(functools.partial(video_embed, patch_size=PATCH))
    out = fn(x, conv_w, conv_b, time_embed)
    out = jax.block_until_ready(out)

    N = (H // PATCH) * (W // PATCH)
    assert out.shape == (B, T * N, EMBED_DIM), out.shape

    # Tight check against a bf16-consistent reference (same rounded inputs).
    ref_bf16 = video_embed_ref(x, conv_w, conv_b, time_embed,
                               patch_size=PATCH, matmul_dtype=jnp.bfloat16)
    assert jnp.allclose(out, ref_bf16, atol=1e-3, rtol=1e-3), \
        float(jnp.max(jnp.abs(out - ref_bf16)))

    # Loose check against the full-f32 module semantics (bf16 input rounding).
    ref_f32 = video_embed_ref(x, conv_w, conv_b, time_embed,
                              patch_size=PATCH, matmul_dtype=jnp.float32)
    assert jnp.allclose(out, ref_f32, atol=2e-2, rtol=2e-2), \
        float(jnp.max(jnp.abs(out - ref_f32)))

    print("KERNEL_OK")
</pallas_src>

<mosaic_0001>
module attributes {stable_mosaic.version = 11 : i64} {
  func.func @video_embed_kernel(%arg0: i32, %arg1: i32, %arg2: memref<1x32x256xbf16, #tpu.memory_space<vmem>>, %arg3: memref<256x128xbf16, #tpu.memory_space<vmem>>, %arg4: memref<8x1x128xf32, #tpu.memory_space<vmem>>, %arg5: memref<1x32x128xf32, #tpu.memory_space<vmem>>) attributes {dimension_semantics = [#tpu.dimension_semantics<parallel>, #tpu.dimension_semantics<parallel>], iteration_bounds = array<i64: 2, 1>, scalar_prefetch = 0 : i64, scratch_operands = 0 : i64, tpu.core_type = #tpu.core_type<tc>, window_params = [{transform_indices = @transform_0, window_bounds = array<i64: 1, 32, 256>}, {pipeline_mode = #tpu.pipeline_mode<synchronous>, transform_indices = @transform_1, window_bounds = array<i64: 256, 128>}, {transform_indices = @transform_2, window_bounds = array<i64: 8, 1, 128>}, {transform_indices = @transform_3, window_bounds = array<i64: 1, 32, 128>}]} {
    %c0 = arith.constant 0 : index
    %c0_0 = arith.constant 0 : index
    %c0_1 = arith.constant 0 : index
    %0 = vector.load %arg2[%c0, %c0_0, %c0_1] : memref<1x32x256xbf16, #tpu.memory_space<vmem>>, vector<1x32x256xbf16>
    %1 = vector.shape_cast %0 : vector<1x32x256xbf16> to vector<32x256xbf16>
    %c0_2 = arith.constant 0 : index
    %c0_3 = arith.constant 0 : index
    %2 = vector.load %arg3[%c0_2, %c0_3] : memref<256x128xbf16, #tpu.memory_space<vmem>>, vector<256x128xbf16>
    %cst = arith.constant dense<0.000000e+00> : vector<32x128xf32>
    %3 = tpu.matmul %1, %2, %cst {dimension_numbers = #tpu.dot_dimension_numbers<[1], [0], [0], [1], [0, 0, 1, 1], [], []>} : vector<32x256xbf16>, vector<256x128xbf16>, vector<32x128xf32> -> vector<32x128xf32>
    %4 = vector.extract_strided_slice %3 {offsets = [0, 0], sizes = [4, 128], strides = [1, 1]} : vector<32x128xf32> to vector<4x128xf32>
    %c0_4 = arith.constant 0 : index
    %c0_5 = arith.constant 0 : index
    %c0_6 = arith.constant 0 : index
    %5 = vector.load %arg4[%c0_4, %c0_5, %c0_6] : memref<8x1x128xf32, #tpu.memory_space<vmem>>, vector<1x1x128xf32>
    %6 = vector.shape_cast %5 : vector<1x1x128xf32> to vector<1x128xf32>
    %7 = vector.broadcast %6 : vector<1x128xf32> to vector<4x128xf32>
    %8 = arith.addf %4, %7 : vector<4x128xf32>
    %c0_7 = arith.constant 0 : index
    %c0_8 = arith.constant 0 : index
    %c0_9 = arith.constant 0 : index
    %9 = vector.load %arg5[%c0_7, %c0_8, %c0_9] : memref<1x32x128xf32, #tpu.memory_space<vmem>>, vector<1x4x128xf32>
    %10 = vector.shape_cast %9 : vector<1x4x128xf32> to vector<4x128xf32>
    %11 = vector.shape_cast %8 : vector<4x128xf32> to vector<1x4x128xf32>
    tpu.vector_store %arg5[%c0_7, %c0_8, %c0_9], %11 {strides = array<i32>} : memref<1x32x128xf32, #tpu.memory_space<vmem>>, vector<1x4x128xf32>,
    %12 = vector.extract_strided_slice %3 {offsets = [4, 0], sizes = [4, 128], strides = [1, 1]} : vector<32x128xf32> to vector<4x128xf32>
    %c1 = arith.constant 1 : index
    %c0_10 = arith.constant 0 : index
    %c0_11 = arith.constant 0 : index
    %13 = vector.load %arg4[%c1, %c0_10, %c0_11] : memref<8x1x128xf32, #tpu.memory_space<vmem>>, vector<1x1x128xf32>
    %14 = vector.shape_cast %13 : vector<1x1x128xf32> to vector<1x128xf32>
    %15 = vector.broadcast %14 : vector<1x128xf32> to vector<4x128xf32>
    %16 = arith.addf %12, %15 : vector<4x128xf32>
    %c0_12 = arith.constant 0 : index
    %c4 = arith.constant 4 : index
    %c0_13 = arith.constant 0 : index
    %17 = vector.load %arg5[%c0_12, %c4, %c0_13] : memref<1x32x128xf32, #tpu.memory_space<vmem>>, vector<1x4x128xf32>
    %18 = vector.shape_cast %17 : vector<1x4x128xf32> to vector<4x128xf32>
    %19 = vector.shape_cast %16 : vector<4x128xf32> to vector<1x4x128xf32>
    tpu.vector_store %arg5[%c0_12, %c4, %c0_13], %19 {strides = array<i32>} : memref<1x32x128xf32, #tpu.memory_space<vmem>>, vector<1x4x128xf32>,
    %20 = vector.extract_strided_slice %3 {offsets = [8, 0], sizes = [4, 128], strides = [1, 1]} : vector<32x128xf32> to vector<4x128xf32>
    %c2 = arith.constant 2 : index
    %c0_14 = arith.constant 0 : index
    %c0_15 = arith.constant 0 : index
    %21 = vector.load %arg4[%c2, %c0_14, %c0_15] : memref<8x1x128xf32, #tpu.memory_space<vmem>>, vector<1x1x128xf32>
    %22 = vector.shape_cast %21 : vector<1x1x128xf32> to vector<1x128xf32>
    %23 = vector.broadcast %22 : vector<1x128xf32> to vector<4x128xf32>
    %24 = arith.addf %20, %23 : vector<4x128xf32>
    %c0_16 = arith.constant 0 : index
    %c8 = arith.constant 8 : index
    %c0_17 = arith.constant 0 : index
    %25 = vector.load %arg5[%c0_16, %c8, %c0_17] : memref<1x32x128xf32, #tpu.memory_space<vmem>>, vector<1x4x128xf32>
    %26 = vector.shape_cast %25 : vector<1x4x128xf32> to vector<4x128xf32>
    %27 = vector.shape_cast %24 : vector<4x128xf32> to vector<1x4x128xf32>
    tpu.vector_store %arg5[%c0_16, %c8, %c0_17], %27 {strides = array<i32>} : memref<1x32x128xf32, #tpu.memory_space<vmem>>, vector<1x4x128xf32>,
    %28 = vector.extract_strided_slice %3 {offsets = [12, 0], sizes = [4, 128], strides = [1, 1]} : vector<32x128xf32> to vector<4x128xf32>
    %c3 = arith.constant 3 : index
    %c0_18 = arith.constant 0 : index
    %c0_19 = arith.constant 0 : index
    %29 = vector.load %arg4[%c3, %c0_18, %c0_19] : memref<8x1x128xf32, #tpu.memory_space<vmem>>, vector<1x1x128xf32>
    %30 = vector.shape_cast %29 : vector<1x1x128xf32> to vector<1x128xf32>
    %31 = vector.broadcast %30 : vector<1x128xf32> to vector<4x128xf32>
    %32 = arith.addf %28, %31 : vector<4x128xf32>
    %c0_20 = arith.constant 0 : index
    %c12 = arith.constant 12 : index
    %c0_21 = arith.constant 0 : index
    %33 = vector.load %arg5[%c0_20, %c12, %c0_21] : memref<1x32x128xf32, #tpu.memory_space<vmem>>, vector<1x4x128xf32>
    %34 = vector.shape_cast %33 : vector<1x4x128xf32> to vector<4x128xf32>
    %35 = vector.shape_cast %32 : vector<4x128xf32> to vector<1x4x128xf32>
    tpu.vector_store %arg5[%c0_20, %c12, %c0_21], %35 {strides = array<i32>} : memref<1x32x128xf32, #tpu.memory_space<vmem>>, vector<1x4x128xf32>,
    %36 = vector.extract_strided_slice %3 {offsets = [16, 0], sizes = [4, 128], strides = [1, 1]} : vector<32x128xf32> to vector<4x128xf32>
    %c4_22 = arith.constant 4 : index
    %c0_23 = arith.constant 0 : index
    %c0_24 = arith.constant 0 : index
    %37 = vector.load %arg4[%c4_22, %c0_23, %c0_24] : memref<8x1x128xf32, #tpu.memory_space<vmem>>, vector<1x1x128xf32>
    %38 = vector.shape_cast %37 : vector<1x1x128xf32> to vector<1x128xf32>
    %39 = vector.broadcast %38 : vector<1x128xf32> to vector<4x128xf32>
    %40 = arith.addf %36, %39 : vector<4x128xf32>
    %c0_25 = arith.constant 0 : index
    %c16 = arith.constant 16 : index
    %c0_26 = arith.constant 0 : index
    %41 = vector.load %arg5[%c0_25, %c16, %c0_26] : memref<1x32x128xf32, #tpu.memory_space<vmem>>, vector<1x4x128xf32>
    %42 = vector.shape_cast %41 : vector<1x4x128xf32> to vector<4x128xf32>
    %43 = vector.shape_cast %40 : vector<4x128xf32> to vector<1x4x128xf32>
    tpu.vector_store %arg5[%c0_25, %c16, %c0_26], %43 {strides = array<i32>} : memref<1x32x128xf32, #tpu.memory_space<vmem>>, vector<1x4x128xf32>,
    %44 = vector.extract_strided_slice %3 {offsets = [20, 0], sizes = [4, 128], strides = [1, 1]} : vector<32x128xf32> to vector<4x128xf32>
    %c5 = arith.constant 5 : index
    %c0_27 = arith.constant 0 : index
    %c0_28 = arith.constant 0 : index
    %45 = vector.load %arg4[%c5, %c0_27, %c0_28] : memref<8x1x128xf32, #tpu.memory_space<vmem>>, vector<1x1x128xf32>
    %46 = vector.shape_cast %45 : vector<1x1x128xf32> to vector<1x128xf32>
    %47 = vector.broadcast %46 : vector<1x128xf32> to vector<4x128xf32>
    %48 = arith.addf %44, %47 : vector<4x128xf32>
    %c0_29 = arith.constant 0 : index
    %c20 = arith.constant 20 : index
    %c0_30 = arith.constant 0 : index
    %49 = vector.load %arg5[%c0_29, %c20, %c0_30] : memref<1x32x128xf32, #tpu.memory_space<vmem>>, vector<1x4x128xf32>
    %50 = vector.shape_cast %49 : vector<1x4x128xf32> to vector<4x128xf32>
    %51 = vector.shape_cast %48 : vector<4x128xf32> to vector<1x4x128xf32>
    tpu.vector_store %arg5[%c0_29, %c20, %c0_30], %51 {strides = array<i32>} : memref<1x32x128xf32, #tpu.memory_space<vmem>>, vector<1x4x128xf32>,
    %52 = vector.extract_strided_slice %3 {offsets = [24, 0], sizes = [4, 128], strides = [1, 1]} : vector<32x128xf32> to vector<4x128xf32>
    %c6 = arith.constant 6 : index
    %c0_31 = arith.constant 0 : index
    %c0_32 = arith.constant 0 : index
    %53 = vector.load %arg4[%c6, %c0_31, %c0_32] : memref<8x1x128xf32, #tpu.memory_space<vmem>>, vector<1x1x128xf32>
    %54 = vector.shape_cast %53 : vector<1x1x128xf32> to vector<1x128xf32>
    %55 = vector.broadcast %54 : vector<1x128xf32> to vector<4x128xf32>
    %56 = arith.addf %52, %55 : vector<4x128xf32>
    %c0_33 = arith.constant 0 : index
    %c24 = arith.constant 24 : index
    %c0_34 = arith.constant 0 : index
    %57 = vector.load %arg5[%c0_33, %c24, %c0_34] : memref<1x32x128xf32, #tpu.memory_space<vmem>>, vector<1x4x128xf32>
    %58 = vector.shape_cast %57 : vector<1x4x128xf32> to vector<4x128xf32>
    %59 = vector.shape_cast %56 : vector<4x128xf32> to vector<1x4x128xf32>
    tpu.vector_store %arg5[%c0_33, %c24, %c0_34], %59 {strides = array<i32>} : memref<1x32x128xf32, #tpu.memory_space<vmem>>, vector<1x4x128xf32>,
    %60 = vector.extract_strided_slice %3 {offsets = [28, 0], sizes = [4, 128], strides = [1, 1]} : vector<32x128xf32> to vector<4x128xf32>
    %c7 = arith.constant 7 : index
    %c0_35 = arith.constant 0 : index
    %c0_36 = arith.constant 0 : index
    %61 = vector.load %arg4[%c7, %c0_35, %c0_36] : memref<8x1x128xf32, #tpu.memory_space<vmem>>, vector<1x1x128xf32>
    %62 = vector.shape_cast %61 : vector<1x1x128xf32> to vector<1x128xf32>
    %63 = vector.broadcast %62 : vector<1x128xf32> to vector<4x128xf32>
    %64 = arith.addf %60, %63 : vector<4x128xf32>
    %c0_37 = arith.constant 0 : index
    %c28 = arith.constant 28 : index
    %c0_38 = arith.constant 0 : index
    %65 = vector.load %arg5[%c0_37, %c28, %c0_38] : memref<1x32x128xf32, #tpu.memory_space<vmem>>, vector<1x4x128xf32>
    %66 = vector.shape_cast %65 : vector<1x4x128xf32> to vector<4x128xf32>
    %67 = vector.shape_cast %64 : vector<4x128xf32> to vector<1x4x128xf32>
    tpu.vector_store %arg5[%c0_37, %c28, %c0_38], %67 {strides = array<i32>} : memref<1x32x128xf32, #tpu.memory_space<vmem>>, vector<1x4x128xf32>,
    return
  }
  func.func @transform_0(%arg0: i32, %arg1: i32) -> (i32, i32, i32) {
    %c0_i32 = arith.constant 0 : i32
    %c0_i32_0 = arith.constant 0 : i32
    return %arg0, %arg1, %c0_i32 : i32, i32, i32
  }
  func.func @transform_1(%arg0: i32, %arg1: i32) -> (i32, i32) {
    %c0_i32 = arith.constant 0 : i32
    %c0_i32_0 = arith.constant 0 : i32
    %c0_i32_1 = arith.constant 0 : i32
    return %c0_i32, %c0_i32_0 : i32, i32
  }
  func.func @transform_2(%arg0: i32, %arg1: i32) -> (i32, i32, i32) {
    %c0_i32 = arith.constant 0 : i32
    %c0_i32_0 = arith.constant 0 : i32
    %c0_i32_1 = arith.constant 0 : i32
    return %arg1, %c0_i32, %c0_i32_0 : i32, i32, i32
  }
  func.func @transform_3(%arg0: i32, %arg1: i32) -> (i32, i32, i32) {
    %c0_i32 = arith.constant 0 : i32
    %c0_i32_0 = arith.constant 0 : i32
    return %arg0, %arg1, %c0_i32 : i32, i32, i32
  }
}

</mosaic_0001>

<llo_original>
// kernel: video_embed.1
$region0: #{video_embed.1}
  #allocation0 [shape = 'u32[]', space=smem, size = 0x4, offset = 0x4, fixed_abs, tag = 'smem constant byte address 0x4 - core index']
  #allocation1 [shape = 'u32[144,128]{1,0:T(1,128)}', space=vmem, size = 0x12000, scoped, tag = 'internal scratch']
  %s0 = inlined_call_operand.vmem [shape: bf16[2,32,256], index: 0, kind: input, shape index: {}]
  %s1 = inlined_call_operand.vmem [shape: bf16[256,128], index: 1, kind: input, shape index: {}]
  %s2 = inlined_call_operand.vmem [shape: f32[8,1,128], index: 2, kind: input, shape index: {}]
  %s3 = inlined_call_operand.hbm [shape: f32[2,32,128], index: 3, kind: output, shape index: {}]
  %s4 = sld [smem:[#allocation0]]
  $region45: #{video_embed.1} parent=0
    _
  %s6 = ssub.s32 1, %s4
  %s7 = scalar_select 0, %s6, %s4
  $region1: #{video_embed.1} parent=0
    #allocation2 [shape = 'u8[32768]{0}', space=vmem, size = 0x8000, scoped, tag = 'output window, operand 0']
    #allocation3 [shape = 's32[2]{0}', space=sflag, size = 0x8, scoped, tag = 'scoped memory for video_embed.1']
    %8 = vsyncpa [#allocation3], 0
    %s9 = scalar_lea.sflag [#allocation3], 1
    %10 = vsyncpa %s9, 0
    loop: start=0, step=1, limit=4
    $region2: #{video_embed.1} parent=1 // loop_pre_header
      _
    $region3: #{video_embed.1} parent=1 // loop_header
      %s12 = sphi 0, %s16
      %p13 = scmp.ge.s32.totalorder %s12, 4
      %s19 = sphi 0, %s31
      %s20 = sphi 0, %s27
      %s21 = sphi 0, %s19
      %s22 = sphi 0, %s20
      %s23 = sphi 0, %s21
      %s24 = sphi 0, %s22
      %s36 = sphi 0, %s38
      %s39 = sphi 0, %s36
      %s40 = sphi 0, %s39
      %s56 = sphi 0, %s40
      %s60 = sphi 0, %s60
      %s62 = sphi 0, %s60
      %s63 = sphi 0, %s62
      %s77 = sphi 0, %s63
      %s83 = sphi 0, %s85
      %s86 = sphi 0, %s83
      %s87 = sphi 0, %s86
      %s103 = sphi 0, %s87
      %s111 = sphi 0, %s113
      %s114 = sphi 0, %s111
      %s115 = sphi 0, %s114
      %s131 = sphi 0, %s115
    $region4: #{video_embed.1} parent=1 // loop_header_branch
      %15 = sbr.rel (%p13) target = $region8
    $region5: #{video_embed.1} parent=1 // loop_body
      %s17 = ssub.s32 %s12, 1
      %s18 = ssub.s32 %s12, 2
      %s25 = sadd.s32 1, %s20
      %p26 = scmp.ge.s32.totalorder %s25, 1
      %s27 = scalar_select %p26, 0, %s25
      %s28 = sadd.s32 1, %s19
      %s29 = scalar_select %p26, %s28, %s19
      %p30 = scmp.ge.s32.totalorder %s29, 2
      %s31 = scalar_select %p30, 0, %s29
      %s32 = ssub.s32 %s19, %s31
      %s33 = ssub.s32 %s20, %s27
      %s34 = sor.u32 %s32, %s33
      %p35 = scmp.eq.s32.totalorder %s34, 0
      %s37 = sadd.s32 %s36, 1
      %s38 = scalar_select %p35, %s36, %s37
      %p41 = pneg %p35
      %p42 = scmp.eq.s32.totalorder %s12, 1
      %p43 = por %p41, %p42
      %p44 = scmp.ne.s32.totalorder %s36, %s39
      %p45 = scmp.eq.s32.totalorder %s12, 0
      %p46 = por %p44, %p45
      %p47 = scmp.ne.s32.totalorder %s36, %s39
      %p48 = scmp.eq.s32.totalorder %s17, 1
      %p49 = por %p47, %p48
      %p50 = scmp.ne.s32.totalorder %s39, %s40
      %p51 = scmp.eq.s32.totalorder %s17, 0
      %p52 = por %p50, %p51
      %p53 = scmp.ne.s32.totalorder %s39, %s40
      %p54 = scmp.eq.s32.totalorder %s18, 1
      %p55 = por %p53, %p54
      %p57 = scmp.ne.s32.totalorder %s40, %s56
      %p58 = scmp.eq.s32.totalorder %s18, 0
      %p59 = por %p57, %p58
      %s61 = sadd.s32 %s60, 1
      %p64 = scmp.eq.s32.totalorder %s12, 1
      %p65 = scmp.ne.s32.totalorder %s60, %s62
      %p66 = scmp.eq.s32.totalorder %s12, 0
      %p67 = por %p65, %p66
      %p68 = scmp.ne.s32.totalorder %s60, %s62
      %p69 = scmp.eq.s32.totalorder %s17, 1
      %p70 = por %p68, %p69
      %p71 = scmp.ne.s32.totalorder %s62, %s63
      %p72 = scmp.eq.s32.totalorder %s17, 0
      %p73 = por %p71, %p72
      %p74 = scmp.ne.s32.totalorder %s62, %s63
      %p75 = scmp.eq.s32.totalorder %s18, 1
      %p76 = por %p74, %p75
      %p78 = scmp.ne.s32.totalorder %s63, %s77
      %p79 = scmp.eq.s32.totalorder %s18, 0
      %p80 = por %p78, %p79
      %s81 = ssub.s32 %s20, %s27
      %p82 = scmp.eq.s32.totalorder %s81, 0
      %s84 = sadd.s32 %s83, 1
      %s85 = scalar_select %p82, %s83, %s84
      %p88 = pneg %p82
      %p89 = scmp.eq.s32.totalorder %s12, 1
      %p90 = por %p88, %p89
      %p91 = scmp.ne.s32.totalorder %s83, %s86
      %p92 = scmp.eq.s32.totalorder %s12, 0
      %p93 = por %p91, %p92
      %p94 = scmp.ne.s32.totalorder %s83, %s86
      %p95 = scmp.eq.s32.totalorder %s17, 1
      %p96 = por %p94, %p95
      %p97 = scmp.ne.s32.totalorder %s86, %s87
      %p98 = scmp.eq.s32.totalorder %s17, 0
      %p99 = por %p97, %p98
      %p100 = scmp.ne.s32.totalorder %s86, %s87
      %p101 = scmp.eq.s32.totalorder %s18, 1
      %p102 = por %p100, %p101
      %p104 = scmp.ne.s32.totalorder %s87, %s103
      %p105 = scmp.eq.s32.totalorder %s18, 0
      %p106 = por %p104, %p105
      %s107 = ssub.s32 %s19, %s31
      %s108 = ssub.s32 %s20, %s27
      %s109 = sor.u32 %s107, %s108
      %p110 = scmp.eq.s32.totalorder %s109, 0
      %s112 = sadd.s32 %s111, 1
      %s113 = scalar_select %p110, %s111, %s112
      %p116 = pneg %p110
      %p117 = scmp.eq.s32.totalorder %s12, 1
      %p118 = por %p116, %p117
      %p119 = scmp.ne.s32.totalorder %s111, %s114
      %p120 = scmp.eq.s32.totalorder %s12, 0
      %p121 = por %p119, %p120
      %p122 = scmp.ne.s32.totalorder %s111, %s114
      %p123 = scmp.eq.s32.totalorder %s17, 1
      %p124 = por %p122, %p123
      %p125 = scmp.ne.s32.totalorder %s114, %s115
      %p126 = scmp.eq.s32.totalorder %s17, 0
      %p127 = por %p125, %p126
      %p128 = scmp.ne.s32.totalorder %s114, %s115
      %p129 = scmp.eq.s32.totalorder %s18, 1
      %p130 = por %p128, %p129
      %p132 = scmp.ne.s32.totalorder %s115, %s131
      %p133 = scmp.eq.s32.totalorder %s18, 0
      %p134 = por %p132, %p133
      %p135 = scmp.le.s32.totalorder 1, %s12
      %p136 = scmp.lt.s32.totalorder %s12, 3
      %p137 = pnand %p135, %p136
      %p138 = pneg %p137
      // Predicated region
      $region9: #{video_embed.1} parent=5 // pred_check
        _
      $region10: #{video_embed.1} parent=5 // pred_check_branch
        %140 = sbr.rel (%p137) target = $region12
      $region11: #{video_embed.1} parent=5 // pred_region
        %s141 = ssub.s32 %s12, 1
        // Predicated region
        $region13: #{video_embed.1} parent=11 // pred_check
          %p142 = pneg %p73
        $region14: #{video_embed.1} parent=11 // pred_check_branch
          %144 = sbr.rel (%p142) target = $region16
        $region15: #{video_embed.1} parent=11 // pred_region
          _
        $region16: #{video_embed.1} parent=11 // pred_fallthru
          _
        // Predicated region
        $region17: #{video_embed.1} parent=11 // pred_check
          %p145 = pneg %p99
        $region18: #{video_embed.1} parent=11 // pred_check_branch
          %147 = sbr.rel (%p145) target = $region20
        $region19: #{video_embed.1} parent=11 // pred_region
          %s148 = smul.u32 8, %s22
          %p149 = scmp.lt.s32.totalorder %s148, 7
          %s150 = scalar_select %p149, %s148, 7
          %s151 = scalar_lea.vmem %s2, %s150
          %s152 = smul.u32 8, %s22
        $region20: #{video_embed.1} parent=11 // pred_fallthru
          _
      $region12: #{video_embed.1} parent=5 // pred_fallthru
        _
      %p153 = scmp.lt.s32.totalorder %s12, 2
      // Predicated region
      $region21: #{video_embed.1} parent=5 // pred_check
        %p154 = pneg %p153
      $region22: #{video_embed.1} parent=5 // pred_check_branch
        %156 = sbr.rel (%p154) target = $region24
      $region23: #{video_embed.1} parent=5 // pred_region
        // Predicated region
        $region25: #{video_embed.1} parent=23 // pred_check
          %p157 = pneg %p46
        $region26: #{video_embed.1} parent=23 // pred_check_branch
          %159 = sbr.rel (%p157) target = $region28
        $region27: #{video_embed.1} parent=23 // pred_region
          %s160 = smul.u32 4, %s20
          %p161 = scmp.lt.s32.totalorder %s19, 1
          %s162 = scalar_select %p161, %s19, 1
          %p163 = scmp.lt.s32.totalorder %s160, 3
          %s164 = scalar_select %p163, %s160, 3
          %s165 = smul.addr %s164, 2
          %s166 = smul.addr %s162, 8
          %s167 = sadd.s32 %s165, %s166
          %s168 = smul.addr %s167, 4
          %s169 = scalar_lea.vmem %s0, %s168
          %s170 = smul.u32 4, %s20
        $region28: #{video_embed.1} parent=23 // pred_fallthru
          _
      $region24: #{video_embed.1} parent=5 // pred_fallthru
        _
      %p171 = scmp.le.s32.totalorder 1, %s12
      %p172 = scmp.lt.s32.totalorder %s12, 3
      %p173 = pnand %p171, %p172
      %p174 = pneg %p173
      // Predicated region
      $region29: #{video_embed.1} parent=5 // pred_check
        _
      $region30: #{video_embed.1} parent=5 // pred_check_branch
        %176 = sbr.rel (%p173) target = $region32
      $region31: #{video_embed.1} parent=5 // pred_region
        %s177 = ssub.s32 %s12, 1
        %s178 = smul.u32 4, %s22
        %p179 = scmp.lt.s32.totalorder %s21, 1
        %s180 = scalar_select %p179, %s21, 1
        %p181 = scmp.lt.s32.totalorder %s178, 3
        %s182 = scalar_select %p181, %s178, 3
        %s183 = smul.addr %s182, 2
        %s184 = smul.addr %s180, 8
        %s185 = sadd.s32 %s183, %s184
        %s186 = smul.addr %s185, 4
        %s187 = scalar_lea.vmem %s0, %s186
        %p188 = pneg %p52
        %p189 = pneg %p49
        %p190 = pneg %p73
        %p191 = pneg %p70
        %s192 = smul.u32 8, %s22
        %p193 = scmp.lt.s32.totalorder %s192, 7
        %s194 = scalar_select %p193, %s192, 7
        %s195 = scalar_lea.vmem %s2, %s194
        %p196 = pneg %p99
        %p197 = pneg %p96
        %p198 = pneg %p127
        %p199 = pneg %p124
        %s200 = sand.u32 %s114, 1
        %s201 = scalar_lea.sflag [#allocation3], %s200
        %s202 = sand.u32 %s114, 1
        %s203 = smul.addr %s202, 32
        %s204 = scalar_lea.vmem [#allocation2], %s203
        %s205 = smul.u32 4, %s22
        %p206 = scmp.lt.s32.totalorder %s21, 1
        %s207 = scalar_select %p206, %s21, 1
        %p208 = scmp.lt.s32.totalorder %s205, 3
        %s209 = scalar_select %p208, %s205, 3
        %s210 = smul.addr %s209, 2
        %s211 = smul.addr %s207, 8
        %s212 = sadd.s32 %s210, %s211
        %s213 = smul.addr %s212, 4
        %s214 = scalar_lea.vmem %s0, %s213
        %s215 = smul.u32 4, %s22
        %s216 = smul.u32 8, %s22
        %p217 = scmp.lt.s32.totalorder %s216, 7
        %s218 = scalar_select %p217, %s216, 7
        %s219 = scalar_lea.vmem %s2, %s218
        %s220 = smul.u32 8, %s22
        %s221 = smul.u32 4, %s22
        %v223 = vld [vmem:[%s214] sm:$0xff]
        %v224 = vld [vmem:[%s214 + $0x8] sm:$0xff]
        %v225 = vld [vmem:[%s214 + $0x10] sm:$0xff]
        %v226 = vld [vmem:[%s214 + $0x18] sm:$0xff]
        %v227 = vld [vmem:[%s1] sm:$0xf]
        %v228 = vld [vmem:[%s1 + $0x4] sm:$0xf]
        %v229 = vld [vmem:[%s1 + $0x8] sm:$0xf]
        %v230 = vld [vmem:[%s1 + $0xc] sm:$0xf]
        %v231 = vld [vmem:[%s1 + $0x10] sm:$0xf]
        %v232 = vld [vmem:[%s1 + $0x14] sm:$0xf]
        %v233 = vld [vmem:[%s1 + $0x18] sm:$0xf]
        %v234 = vld [vmem:[%s1 + $0x1c] sm:$0xf]
        %v235 = vld [vmem:[%s1 + $0x20] sm:$0xf]
        %v236 = vld [vmem:[%s1 + $0x24] sm:$0xf]
        %v237 = vld [vmem:[%s1 + $0x28] sm:$0xf]
        %v238 = vld [vmem:[%s1 + $0x2c] sm:$0xf]
        %v239 = vld [vmem:[%s1 + $0x30] sm:$0xf]
        %v240 = vld [vmem:[%s1 + $0x34] sm:$0xf]
        %v241 = vld [vmem:[%s1 + $0x38] sm:$0xf]
        %v242 = vld [vmem:[%s1 + $0x3c] sm:$0xf]
        %v243 = vld [vmem:[%s1 + $0x40] sm:$0xf]
        %v244 = vld [vmem:[%s1 + $0x44] sm:$0xf]
        %v245 = vld [vmem:[%s1 + $0x48] sm:$0xf]
        %v246 = vld [vmem:[%s1 + $0x4c] sm:$0xf]
        %v247 = vld [vmem:[%s1 + $0x50] sm:$0xf]
        %v248 = vld [vmem:[%s1 + $0x54] sm:$0xf]
        %v249 = vld [vmem:[%s1 + $0x58] sm:$0xf]
        %v250 = vld [vmem:[%s1 + $0x5c] sm:$0xf]
        %v251 = vld [vmem:[%s1 + $0x60] sm:$0xf]
        %v252 = vld [vmem:[%s1 + $0x64] sm:$0xf]
        %v253 = vld [vmem:[%s1 + $0x68] sm:$0xf]
        %v254 = vld [vmem:[%s1 + $0x6c] sm:$0xf]
        %v255 = vld [vmem:[%s1 + $0x70] sm:$0xf]
        %v256 = vld [vmem:[%s1 + $0x74] sm:$0xf]
        %v257 = vld [vmem:[%s1 + $0x78] sm:$0xf]
        %v258 = vld [vmem:[%s1 + $0x7c] sm:$0xf]
        %v263 = vunpack.c.l.b16 %v223
        %v264 = vunpack.c.h.b16 %v223
        %v265 = vunpack.c.l.b16 %v224
        %v266 = vunpack.c.h.b16 %v224
        %v267 = vunpack.c.l.b16 %v225
        %v268 = vunpack.c.h.b16 %v225
        %v269 = vunpack.c.l.b16 %v226
        %v270 = vunpack.c.h.b16 %v226
        %v271 = vpack.c.b16 %v265, %v263
        %v272 = vpack.c.b16 %v266, %v264
        %v273 = vpack.c.b16 %v269, %v267
        %v274 = vpack.c.b16 %v270, %v268
        %v311 = vunpack.c.l.b16 %v227
        %v312 = vunpack.c.l.b16 %v228
        %v313 = vunpack.c.l.b16 %v229
        %v314 = vunpack.c.l.b16 %v230
        %v315 = vunpack.c.l.b16 %v231
        %v316 = vunpack.c.l.b16 %v232
        %v317 = vunpack.c.l.b16 %v233
        %v318 = vunpack.c.l.b16 %v234
        %v319 = vunpack.c.l.b16 %v235
        %v320 = vunpack.c.l.b16 %v236
        %v321 = vunpack.c.l.b16 %v237
        %v322 = vunpack.c.l.b16 %v238
        %v323 = vunpack.c.l.b16 %v239
        %v324 = vunpack.c.l.b16 %v240
        %v325 = vunpack.c.l.b16 %v241
        %v326 = vunpack.c.l.b16 %v242
        %v327 = vunpack.c.l.b16 %v243
        %v328 = vunpack.c.l.b16 %v244
        %v329 = vunpack.c.l.b16 %v245
        %v330 = vunpack.c.l.b16 %v246
        %v331 = vunpack.c.l.b16 %v247
        %v332 = vunpack.c.l.b16 %v248
        %v333 = vunpack.c.l.b16 %v249
        %v334 = vunpack.c.l.b16 %v250
        %v335 = vunpack.c.l.b16 %v251
        %v336 = vunpack.c.l.b16 %v252
        %v337 = vunpack.c.l.b16 %v253
        %v338 = vunpack.c.l.b16 %v254
        %v339 = vunpack.c.l.b16 %v255
        %v340 = vunpack.c.l.b16 %v256
        %v341 = vunpack.c.l.b16 %v257
        %v342 = vunpack.c.l.b16 %v258
        %v343 = vpack.c.b16 %v312, %v311
        %v344 = vpack.c.b16 %v314, %v313
        %v345 = vpack.c.b16 %v316, %v315
        %v346 = vpack.c.b16 %v318, %v317
        %v347 = vpack.c.b16 %v320, %v319
        %v348 = vpack.c.b16 %v322, %v321
        %v349 = vpack.c.b16 %v324, %v323
        %v350 = vpack.c.b16 %v326, %v325
        %v351 = vpack.c.b16 %v328, %v327
        %v352 = vpack.c.b16 %v330, %v329
        %v353 = vpack.c.b16 %v332, %v331
        %v354 = vpack.c.b16 %v334, %v333
        %v355 = vpack.c.b16 %v336, %v335
        %v356 = vpack.c.b16 %v338, %v337
        %v357 = vpack.c.b16 %v340, %v339
        %v358 = vpack.c.b16 %v342, %v341
        %375 = vmatprep.subr.bf16.mxu0 0
        %376 = vmatpush1.bf16.msra.mxu0 %v343
        %377 = vmatprep.subr.bf16.mxu0 0
        %378 = vmatpush1.bf16.msra.mxu0 %v344
        %379 = vmatprep.subr.bf16.mxu0 0
        %380 = vmatpush1.bf16.msra.mxu0 %v345
        %381 = vmatprep.subr.bf16.mxu0 0
        %382 = vmatpush1.bf16.msra.mxu0 %v346
        %383 = vmatprep.subr.bf16.mxu0 0
        %384 = vmatpush1.bf16.msra.mxu0 %v347
        %385 = vmatprep.subr.bf16.mxu0 0
        %386 = vmatpush1.bf16.msra.mxu0 %v348
        %387 = vmatprep.subr.bf16.mxu0 0
        %388 = vmatpush1.bf16.msra.mxu0 %v349
        %389 = vmatprep.subr.bf16.mxu0 0
        %390 = vmatpush1.bf16.msra.mxu0 %v350
        %391 = vmatprep.subr.bf16.mxu0 0
        %392 = vmatpush1.bf16.msra.mxu0 %v351
        %393 = vmatprep.subr.bf16.mxu0 0
        %394 = vmatpush1.bf16.msra.mxu0 %v352
        %395 = vmatprep.subr.bf16.mxu0 0
        %396 = vmatpush1.bf16.msra.mxu0 %v353
        %397 = vmatprep.subr.bf16.mxu0 0
        %398 = vmatpush1.bf16.msra.mxu0 %v354
        %399 = vmatprep.subr.bf16.mxu0 0
        %400 = vmatpush1.bf16.msra.mxu0 %v355
        %401 = vmatprep.subr.bf16.mxu0 0
        %402 = vmatpush1.bf16.msra.mxu0 %v356
        %403 = vmatprep.subr.bf16.mxu0 0
        %404 = vmatpush1.bf16.msra.mxu0 %v357
        %405 = vmatprep.subr.bf16.mxu0 0
        %406 = vmatpush1.bf16.msra.mxu0 %v358
        %407 = vmatprep.mubr.bf16.mxu0 %v272
        %408 = vmatmul.mubr.bf16.gmra.mrb[0].mxu0 %v271
        %v409 = vpop.f32.mrb[0].mxu0
        %v410 = vadd.f32 0.0, %v409
        %v411 = vpop.f32.mrb[0].mxu0
        %v412 = vpop.f32.mrb[0].mxu0
        %v413 = vadd.f32 0.0, %v412
        %v414 = vpop.f32.mrb[0].mxu0
        %415 = vmatprep.mubr.bf16.mxu0 %v274
        %416 = vmatmul.mubr.bf16.gmra.mrb[0].mxu0 %v273
        %v417 = vpop.f32.mrb[0].mxu0
        %v418 = vadd.f32 0.0, %v417
        %v419 = vpop.f32.mrb[0].mxu0
        %v420 = vpop.f32.mrb[0].mxu0
        %v421 = vadd.f32 0.0, %v420
        %v422 = vpop.f32.mrb[0].mxu0
        %423 = vdwg.mxu0
        %v424 = vld [vmem:[%s219] sm:$0x1]
        %v426 = vlaneseq
        %v427 = vshrl.u32 %v426, 7
        %v428 = vsub.s32 0, %v427
        %v429 = vrot.slane %v424, %v428
        %v431 = vadd.f32 %v410, %v429
        %432 = vst [vmem:[%s204] sm:$0xf] %v431
        %s433 = scalar_lea.vmem %s219, 1
        %v434 = vld [vmem:[%s433] sm:$0x1]
        %v436 = vlaneseq
        %v437 = vshrl.u32 %v436, 7
        %v438 = vsub.s32 0, %v437
        %v439 = vrot.slane %v434, %v438
        %v441 = vadd.f32 %v410, %v439
        %442 = vst [vmem:[%s204] sm:$0xf0] %v441
        %s443 = scalar_lea.vmem %s219, 2
        %v444 = vld [vmem:[%s443] sm:$0x1]
        %v446 = vlaneseq
        %v447 = vshrl.u32 %v446, 7
        %v448 = vsub.s32 0, %v447
        %v449 = vrot.slane %v444, %v448
        %v451 = vadd.f32 %v413, %v449
        %452 = vst [vmem:[%s204 + $0x8] sm:$0xf] %v451
        %s453 = scalar_lea.vmem %s219, 3
        %v454 = vld [vmem:[%s453] sm:$0x1]
        %v456 = vlaneseq
        %v457 = vshrl.u32 %v456, 7
        %v458 = vsub.s32 0, %v457
        %v459 = vrot.slane %v454, %v458
        %v461 = vadd.f32 %v413, %v459
        %462 = vst [vmem:[%s204 + $0x8] sm:$0xf0] %v461
        %s463 = scalar_lea.vmem %s219, 4
        %v464 = vld [vmem:[%s463] sm:$0x1]
        %v466 = vlaneseq
        %v467 = vshrl.u32 %v466, 7
        %v468 = vsub.s32 0, %v467
        %v469 = vrot.slane %v464, %v468
        %v471 = vadd.f32 %v418, %v469
        %472 = vst [vmem:[%s204 + $0x10] sm:$0xf] %v471
        %s473 = scalar_lea.vmem %s219, 5
        %v474 = vld [vmem:[%s473] sm:$0x1]
        %v476 = vlaneseq
        %v477 = vshrl.u32 %v476, 7
        %v478 = vsub.s32 0, %v477
        %v479 = vrot.slane %v474, %v478
        %v481 = vadd.f32 %v418, %v479
        %482 = vst [vmem:[%s204 + $0x10] sm:$0xf0] %v481
        %s483 = scalar_lea.vmem %s219, 6
        %v484 = vld [vmem:[%s483] sm:$0x1]
        %v486 = vlaneseq
        %v487 = vshrl.u32 %v486, 7
        %v488 = vsub.s32 0, %v487
        %v489 = vrot.slane %v484, %v488
        %v491 = vadd.f32 %v421, %v489
        %492 = vst [vmem:[%s204 + $0x18] sm:$0xf] %v491
        %s493 = scalar_lea.vmem %s219, 7
        %v494 = vld [vmem:[%s493] sm:$0x1]
        %v496 = vlaneseq
        %v497 = vshrl.u32 %v496, 7
        %v498 = vsub.s32 0, %v497
        %v499 = vrot.slane %v494, %v498
        %v501 = vadd.f32 %v421, %v499
        %502 = vst [vmem:[%s204 + $0x18] sm:$0xf0] %v501
        %s503 = sand.u32 %s114, 1
        %s504 = scalar_lea.sflag [#allocation3], %s503
        %s505 = sand.u32 %s114, 1
        %s506 = smul.addr %s505, 32
        %s507 = scalar_lea.vmem [#allocation2], %s506
        // Predicated region
        $region33: #{video_embed.1} parent=31 // pred_check
          %p508 = pneg %p124
        $region34: #{video_embed.1} parent=31 // pred_check_branch
          %510 = sbr.rel (%p508) target = $region36
        $region35: #{video_embed.1} parent=31 // pred_region
          %s511 = smul.u32 4, %s22
          %s513 = ssub.s32 512, 512
          %514 = vsyncadd %s504, %s513
          %s515 = smul.addr %s21, 4
          %s516 = sadd.s32 %s511, %s515
          %s517 = smul.addr %s516, 128
          %s518 = scalar_lea.hbm %s3, %s517
          %s519 = sshll.u32 %s507, 4
          %s520 = int_to_ptr.vmem [resolvable:$true] %s519
          %525 = dma.vmem_to_hbm [thread:$0]  %s520, 512, %s518, %s504, 128, 128, 8
        $region36: #{video_embed.1} parent=31 // pred_fallthru
          _
      $region32: #{video_embed.1} parent=5 // pred_fallthru
        _
      %p526 = scmp.le.s32.totalorder 2, %s12
      // Predicated region
      $region37: #{video_embed.1} parent=5 // pred_check
        %p527 = pneg %p526
      $region38: #{video_embed.1} parent=5 // pred_check_branch
        %529 = sbr.rel (%p527) target = $region40
      $region39: #{video_embed.1} parent=5 // pred_region
        %s530 = ssub.s32 %s12, 2
        // Predicated region
        $region41: #{video_embed.1} parent=39 // pred_check
          %p531 = pneg %p130
        $region42: #{video_embed.1} parent=39 // pred_check_branch
          %533 = sbr.rel (%p531) target = $region44
        $region43: #{video_embed.1} parent=39 // pred_region
          %s534 = sand.u32 %s115, 1
          %s535 = scalar_lea.sflag [#allocation3], %s534
          %s536 = sand.u32 %s115, 1
          %s537 = smul.addr %s536, 32
          %s538 = scalar_lea.vmem [#allocation2], %s537
          %539 = dma.done %s535, 512
        $region44: #{video_embed.1} parent=39 // pred_fallthru
          _
      $region40: #{video_embed.1} parent=5 // pred_fallthru
        _
    $region6: #{video_embed.1} parent=1 // loop_footer
      %s16 = sadd.s32 1, %s12
    $region7: #{video_embed.1} parent=1 // loop_footer_branch
      %11 = sbr.rel target = $region3
    $region8: #{video_embed.1} parent=1 // loop_exit
      _
    %540 = vsyncpa [#allocation3], 1
    %s541 = scalar_lea.sflag [#allocation3], 1
    %542 = vsyncpa %s541, 1

</llo_original>
